<compile_context>
chip_gen: v7x
topology: tpu7x:2x2x1
jax: 0.10.0
libtpu: 0.0.40
codegen_flags: <defaults>
</compile_context>

<pallas_src>
import functools

import jax
import jax.numpy as jnp
from jax.experimental import pallas as pl
from jax.experimental.pallas import tpu as pltpu

_BN_EPS = 1e-5
_LANE = 128
_SMALL_C_MAX = 8                 # fused-VPU path threshold (v7x-safe)
_MAX_TP = 128 * 1024             # cap pixel tile; keeps intermediates modest
_XO_BUDGET = 8 * 1024 * 1024     # budget for double-buffered x + out (bytes)


def _round_up(x, m):
    return ((x + m - 1) // m) * m


def _choose_tp(C, HW, N):
    """Lane-dense pixel tile sized from a VMEM budget (per perf review)."""
    hw_pad = _round_up(HW, _LANE)
    per_pixel = 2 * (C + 1) * 4              # dbl-buffered x column + out column, f32
    tp = (_XO_BUDGET // per_pixel) // _LANE * _LANE
    tp = max(_LANE, min(tp, _MAX_TP, hw_pad))
    # Keep >= 2 grid blocks so both TensorCores get work (v7x megacore).
    if N * ((HW + tp - 1) // tp) < 2 and tp > _LANE:
        tp = max(_LANE, _round_up(hw_pad // 2, _LANE))
    return tp


def _decoder_kernel_small(x_ref, w1_ref, b1_ref, w2_ref, b2_ref, o_ref, *, C):
    """Fused VPU path for tiny C; weights are SMEM scalars.

    y(1,TP) = sigmoid(b2 + sum_o w2[o] * relu(b1[o] + sum_i w1[o,i] * x[i]))
    No (C,TP) intermediate, no final sublane reduce.
    """
    xs = [x_ref[0, i:i + 1, :].astype(jnp.float32) for i in range(C)]  # C x (1,TP)
    y = None
    for o in range(C):                        # static unroll, C <= 8
        h = xs[0] * w1_ref[o, 0]
        for i in range(1, C):
            h = h + w1_ref[o, i] * xs[i]
        h = jnp.maximum(h + b1_ref[o], 0.0)   # ReLU
        y = w2_ref[o] * h if y is None else y + w2_ref[o] * h
    y = y + b2_ref[0]
    o_ref[0] = jax.nn.sigmoid(y).astype(o_ref.dtype)


def _decoder_kernel_mxu(x_ref, w1_ref, b1_ref, w2_ref, b2_ref, o_ref):
    """MXU path: bf16 matmul with f32 accumulation, then sublane reduce."""
    w1 = w1_ref[...]                                    # (C, C) bf16, BN folded
    x = x_ref[0].astype(w1.dtype)                       # (C, TP) -> bf16
    h = jnp.dot(w1, x, preferred_element_type=jnp.float32) + b1_ref[...]
    h = jnp.maximum(h, 0.0)                             # ReLU (f32)
    y = jnp.sum(w2_ref[...] * h, axis=0, keepdims=True) + b2_ref[0]   # (1, TP)
    o_ref[0] = jax.nn.sigmoid(y).astype(o_ref.dtype)


@functools.partial(jax.jit, static_argnames=("tp", "out_dtype"))
def ms_decoder_forward(x_nchw, params, tp=None, out_dtype=jnp.float32):
    """x_nchw: (N, C, H, W) float32.  Returns (N, 1, H, W) in out_dtype."""
    w1, b1, gamma, beta, mean, var, w2, b2 = params
    N, C, H, W = x_nchw.shape
    HW = H * W

    # Fold conv1 bias + inference BatchNorm into conv1 weights (host side).
    scale = gamma / jnp.sqrt(var + _BN_EPS)                          # (C,)
    w1f = (w1 * scale[:, None]).astype(jnp.float32)                  # (Cout, Cin)
    b1f = (b1 * scale + (beta - mean * scale)).astype(jnp.float32)   # (C,)
    w2f = w2.astype(jnp.float32)                                     # (C,)
    b2s = b2.reshape(1).astype(jnp.float32)                          # (1,)

    # NCHW is already the right layout: free reshape, no transpose, no pad.
    x3 = x_nchw.reshape(N, C, HW)

    TP = (_choose_tp(C, HW, N) if tp is None
          else max(_LANE, min(tp, _round_up(HW, _LANE))))
    grid = (N, pl.cdiv(HW, TP))
    # NOTE: ragged last pixel block is write-masked; padded lanes may carry
    # garbage through sigmoid but never reach HBM.

    small = C <= _SMALL_C_MAX
    smem_spec = pl.BlockSpec(memory_space=pltpu.MemorySpace.SMEM)
    if small:
        kernel = functools.partial(_decoder_kernel_small, C=C)
        w1_arg, b1_arg, w2_arg = w1f, b1f, w2f             # SMEM scalar reads
        w1_spec = b1_spec = w2_spec = smem_spec
    else:
        kernel = _decoder_kernel_mxu
        w1_arg = w1f.astype(jnp.bfloat16)                  # bf16 MXU, f32 acc
        b1_arg = b1f.reshape(C, 1)
        w2_arg = w2f.reshape(C, 1)
        w1_spec = pl.BlockSpec((C, C), lambda n, p: (0, 0))
        b1_spec = pl.BlockSpec((C, 1), lambda n, p: (0, 0))
        w2_spec = pl.BlockSpec((C, 1), lambda n, p: (0, 0))

    # Scoped-VMEM limit sized from the actual tiles (v5e default is only
    # 16 MiB; capped at 40 MiB so it also fits v7x's 64 MiB physical VMEM).
    x_buf = 2 * C * TP * x3.dtype.itemsize                 # double-buffered input
    o_buf = 2 * TP * jnp.dtype(out_dtype).itemsize         # double-buffered output
    w_buf = int(w1_arg.size) * w1_arg.dtype.itemsize + 64 * C + 1024
    interm = (2 * C + 8) * TP * 4                          # h / bf16 copy / y rows
    vmem_limit = int(min(max(x_buf + o_buf + w_buf + interm + (4 << 20),
                             16 << 20), 40 << 20))

    out = pl.pallas_call(
        kernel,
        out_shape=jax.ShapeDtypeStruct((N, 1, HW), out_dtype),
        grid_spec=pltpu.PrefetchScalarGridSpec(
            num_scalar_prefetch=0,
            grid=grid,
            in_specs=[
                pl.BlockSpec((1, C, TP), lambda n, p: (n, 0, p)),   # x slab
                w1_spec,                                            # w1 (folded)
                b1_spec,                                            # b1 (folded)
                w2_spec,                                            # w2
                smem_spec,                                          # b2 scalar
            ],
            out_specs=pl.BlockSpec((1, 1, TP), lambda n, p: (n, 0, p)),
        ),
        compiler_params=pltpu.CompilerParams(
            dimension_semantics=("parallel", "parallel"),
            vmem_limit_bytes=vmem_limit),
    )(x3, w1_arg, b1_arg, w2_arg, b2s)

    return out.reshape(N, 1, H, W)


def init_params(key, inplanes):
    """Deterministic synthetic parameters matching MSDecoder.__init__ shapes."""
    ks = jax.random.split(key, 8)
    C = inplanes
    # Conv2d(C, C, 1): PyTorch weight (C_out, C_in, 1, 1) -> (C_out, C_in).
    w1 = jax.random.normal(ks[0], (C, C), jnp.float32) * 0.1
    b1 = jax.random.normal(ks[1], (C,), jnp.float32) * 0.1
    # BatchNorm2d(C) inference-mode parameters.
    gamma = 1.0 + 0.1 * jax.random.normal(ks[2], (C,), jnp.float32)
    beta = 0.1 * jax.random.normal(ks[3], (C,), jnp.float32)
    mean = 0.1 * jax.random.normal(ks[4], (C,), jnp.float32)
    var = jnp.abs(1.0 + 0.1 * jax.random.normal(ks[5], (C,), jnp.float32))
    # Conv2d(C, 1, 1): weight (1, C, 1, 1) -> (C,); bias scalar.
    w2 = jax.random.normal(ks[6], (C,), jnp.float32) * 0.1
    b2 = jax.random.normal(ks[7], (), jnp.float32) * 0.1
    return (w1, b1, gamma, beta, mean, var, w2, b2)


def reference_forward(x_nchw, params):
    """Plain-JAX f32 reference with unfolded BN (checks the host-side folding)."""
    w1, b1, gamma, beta, mean, var, w2, b2 = params
    N, C, H, W = x_nchw.shape
    x = x_nchw.reshape(N, C, H * W)
    h = jnp.einsum("oi,nip->nop", w1, x) + b1[None, :, None]
    inv_std = (gamma / jnp.sqrt(var + _BN_EPS))[None, :, None]
    h = (h - mean[None, :, None]) * inv_std + beta[None, :, None]
    h = jnp.maximum(h, 0.0)
    y = jnp.einsum("i,nip->np", w2, h)[:, None, :] + b2
    return jax.nn.sigmoid(y).reshape(N, 1, H, W)


if __name__ == "__main__":
    key = jax.random.PRNGKey(0)
    k_x, k_p, k_x2, k_p2 = jax.random.split(key, 4)

    # 1) Small-C config (fused VPU path), inplanes = 4.
    N, C, H, W = 2, 4, 16, 16
    x = jax.random.normal(k_x, (N, C, H, W), jnp.float32)
    params = init_params(k_p, C)
    out = jax.block_until_ready(ms_decoder_forward(x, params))
    ref = reference_forward(x, params)
    assert out.shape == (N, 1, H, W), out.shape
    err = float(jnp.max(jnp.abs(out - ref)))
    assert jnp.allclose(out, ref, atol=1e-5, rtol=1e-5), (
        "small-C mismatch vs reference, max abs err = %g" % err)

    # 2) Larger-C config (bf16 MXU path) — validates the matmul branch.
    C2 = 32
    x2 = jax.random.normal(k_x2, (N, C2, H, W), jnp.float32)
    params2 = init_params(k_p2, C2)
    out2 = jax.block_until_ready(ms_decoder_forward(x2, params2))
    ref2 = reference_forward(x2, params2)
    assert out2.shape == (N, 1, H, W), out2.shape
    err2 = float(jnp.max(jnp.abs(out2 - ref2)))
    assert jnp.allclose(out2, ref2, atol=1e-2, rtol=1e-2), (
        "MXU-path mismatch vs reference, max abs err = %g" % err2)

    print("KERNEL_OK")
</pallas_src>

<mosaic_0001>
module attributes {stable_mosaic.version = 11 : i64} {
  func.func @_decoder_kernel_small(%arg0: i32, %arg1: i32, %arg2: memref<1x4x256xf32, #tpu.memory_space<vmem>>, %arg3: memref<4x4xf32, #tpu.memory_space<smem>>, %arg4: memref<4xf32, #tpu.memory_space<smem>>, %arg5: memref<4xf32, #tpu.memory_space<smem>>, %arg6: memref<1xf32, #tpu.memory_space<smem>>, %arg7: memref<1x1x256xf32, #tpu.memory_space<vmem>>) attributes {dimension_semantics = [#tpu.dimension_semantics<parallel>, #tpu.dimension_semantics<parallel>], iteration_bounds = array<i64: 2, 1>, scalar_prefetch = 0 : i64, scratch_operands = 0 : i64, tpu.core_type = #tpu.core_type<tc>, window_params = [{transform_indices = @transform_0, window_bounds = array<i64: 1, 4, 256>}, {transform_indices = @transform_1, window_bounds = array<i64: 4, 4>}, {transform_indices = @transform_2, window_bounds = array<i64: 4>}, {transform_indices = @transform_3, window_bounds = array<i64: 4>}, {transform_indices = @transform_4, window_bounds = array<i64: 1>}, {transform_indices = @transform_5, window_bounds = array<i64: 1, 1, 256>}]} {
    %c0 = arith.constant 0 : index
    %c0_0 = arith.constant 0 : index
    %c0_1 = arith.constant 0 : index
    %0 = vector.load %arg2[%c0, %c0_0, %c0_1] : memref<1x4x256xf32, #tpu.memory_space<vmem>>, vector<1x1x256xf32>
    %1 = vector.shape_cast %0 : vector<1x1x256xf32> to vector<1x256xf32>
    %c0_2 = arith.constant 0 : index
    %c1 = arith.constant 1 : index
    %c0_3 = arith.constant 0 : index
    %2 = vector.load %arg2[%c0_2, %c1, %c0_3] : memref<1x4x256xf32, #tpu.memory_space<vmem>>, vector<1x1x256xf32>
    %3 = vector.shape_cast %2 : vector<1x1x256xf32> to vector<1x256xf32>
    %c0_4 = arith.constant 0 : index
    %c2 = arith.constant 2 : index
    %c0_5 = arith.constant 0 : index
    %4 = vector.load %arg2[%c0_4, %c2, %c0_5] : memref<1x4x256xf32, #tpu.memory_space<vmem>>, vector<1x1x256xf32>
    %5 = vector.shape_cast %4 : vector<1x1x256xf32> to vector<1x256xf32>
    %c0_6 = arith.constant 0 : index
    %c3 = arith.constant 3 : index
    %c0_7 = arith.constant 0 : index
    %6 = vector.load %arg2[%c0_6, %c3, %c0_7] : memref<1x4x256xf32, #tpu.memory_space<vmem>>, vector<1x1x256xf32>
    %7 = vector.shape_cast %6 : vector<1x1x256xf32> to vector<1x256xf32>
    %c0_8 = arith.constant 0 : index
    %c0_9 = arith.constant 0 : index
    %8 = memref.load %arg3[%c0_8, %c0_9] : memref<4x4xf32, #tpu.memory_space<smem>>
    %9 = vector.broadcast %8 : f32 to vector<1x256xf32>
    %10 = arith.mulf %1, %9 : vector<1x256xf32>
    %c0_10 = arith.constant 0 : index
    %c1_11 = arith.constant 1 : index
    %11 = memref.load %arg3[%c0_10, %c1_11] : memref<4x4xf32, #tpu.memory_space<smem>>
    %12 = vector.broadcast %11 : f32 to vector<1x256xf32>
    %13 = arith.mulf %12, %3 : vector<1x256xf32>
    %14 = arith.addf %10, %13 : vector<1x256xf32>
    %c0_12 = arith.constant 0 : index
    %c2_13 = arith.constant 2 : index
    %15 = memref.load %arg3[%c0_12, %c2_13] : memref<4x4xf32, #tpu.memory_space<smem>>
    %16 = vector.broadcast %15 : f32 to vector<1x256xf32>
    %17 = arith.mulf %16, %5 : vector<1x256xf32>
    %18 = arith.addf %14, %17 : vector<1x256xf32>
    %c0_14 = arith.constant 0 : index
    %c3_15 = arith.constant 3 : index
    %19 = memref.load %arg3[%c0_14, %c3_15] : memref<4x4xf32, #tpu.memory_space<smem>>
    %20 = vector.broadcast %19 : f32 to vector<1x256xf32>
    %21 = arith.mulf %20, %7 : vector<1x256xf32>
    %22 = arith.addf %18, %21 : vector<1x256xf32>
    %c0_16 = arith.constant 0 : index
    %23 = memref.load %arg4[%c0_16] : memref<4xf32, #tpu.memory_space<smem>>
    %24 = vector.broadcast %23 : f32 to vector<1x256xf32>
    %25 = arith.addf %22, %24 : vector<1x256xf32>
    %cst = arith.constant 0.000000e+00 : f32
    %26 = vector.broadcast %cst : f32 to vector<1x256xf32>
    %27 = arith.maximumf %25, %26 : vector<1x256xf32>
    %c0_17 = arith.constant 0 : index
    %28 = memref.load %arg5[%c0_17] : memref<4xf32, #tpu.memory_space<smem>>
    %29 = vector.broadcast %28 : f32 to vector<1x256xf32>
    %30 = arith.mulf %29, %27 : vector<1x256xf32>
    %c1_18 = arith.constant 1 : index
    %c0_19 = arith.constant 0 : index
    %31 = memref.load %arg3[%c1_18, %c0_19] : memref<4x4xf32, #tpu.memory_space<smem>>
    %32 = vector.broadcast %31 : f32 to vector<1x256xf32>
    %33 = arith.mulf %1, %32 : vector<1x256xf32>
    %c1_20 = arith.constant 1 : index
    %c1_21 = arith.constant 1 : index
    %34 = memref.load %arg3[%c1_20, %c1_21] : memref<4x4xf32, #tpu.memory_space<smem>>
    %35 = vector.broadcast %34 : f32 to vector<1x256xf32>
    %36 = arith.mulf %35, %3 : vector<1x256xf32>
    %37 = arith.addf %33, %36 : vector<1x256xf32>
    %c1_22 = arith.constant 1 : index
    %c2_23 = arith.constant 2 : index
    %38 = memref.load %arg3[%c1_22, %c2_23] : memref<4x4xf32, #tpu.memory_space<smem>>
    %39 = vector.broadcast %38 : f32 to vector<1x256xf32>
    %40 = arith.mulf %39, %5 : vector<1x256xf32>
    %41 = arith.addf %37, %40 : vector<1x256xf32>
    %c1_24 = arith.constant 1 : index
    %c3_25 = arith.constant 3 : index
    %42 = memref.load %arg3[%c1_24, %c3_25] : memref<4x4xf32, #tpu.memory_space<smem>>
    %43 = vector.broadcast %42 : f32 to vector<1x256xf32>
    %44 = arith.mulf %43, %7 : vector<1x256xf32>
    %45 = arith.addf %41, %44 : vector<1x256xf32>
    %c1_26 = arith.constant 1 : index
    %46 = memref.load %arg4[%c1_26] : memref<4xf32, #tpu.memory_space<smem>>
    %47 = vector.broadcast %46 : f32 to vector<1x256xf32>
    %48 = arith.addf %45, %47 : vector<1x256xf32>
    %cst_27 = arith.constant 0.000000e+00 : f32
    %49 = vector.broadcast %cst_27 : f32 to vector<1x256xf32>
    %50 = arith.maximumf %48, %49 : vector<1x256xf32>
    %c1_28 = arith.constant 1 : index
    %51 = memref.load %arg5[%c1_28] : memref<4xf32, #tpu.memory_space<smem>>
    %52 = vector.broadcast %51 : f32 to vector<1x256xf32>
    %53 = arith.mulf %52, %50 : vector<1x256xf32>
    %54 = arith.addf %30, %53 : vector<1x256xf32>
    %c2_29 = arith.constant 2 : index
    %c0_30 = arith.constant 0 : index
    %55 = memref.load %arg3[%c2_29, %c0_30] : memref<4x4xf32, #tpu.memory_space<smem>>
    %56 = vector.broadcast %55 : f32 to vector<1x256xf32>
    %57 = arith.mulf %1, %56 : vector<1x256xf32>
    %c2_31 = arith.constant 2 : index
    %c1_32 = arith.constant 1 : index
    %58 = memref.load %arg3[%c2_31, %c1_32] : memref<4x4xf32, #tpu.memory_space<smem>>
    %59 = vector.broadcast %58 : f32 to vector<1x256xf32>
    %60 = arith.mulf %59, %3 : vector<1x256xf32>
    %61 = arith.addf %57, %60 : vector<1x256xf32>
    %c2_33 = arith.constant 2 : index
    %c2_34 = arith.constant 2 : index
    %62 = memref.load %arg3[%c2_33, %c2_34] : memref<4x4xf32, #tpu.memory_space<smem>>
    %63 = vector.broadcast %62 : f32 to vector<1x256xf32>
    %64 = arith.mulf %63, %5 : vector<1x256xf32>
    %65 = arith.addf %61, %64 : vector<1x256xf32>
    %c2_35 = arith.constant 2 : index
    %c3_36 = arith.constant 3 : index
    %66 = memref.load %arg3[%c2_35, %c3_36] : memref<4x4xf32, #tpu.memory_space<smem>>
    %67 = vector.broadcast %66 : f32 to vector<1x256xf32>
    %68 = arith.mulf %67, %7 : vector<1x256xf32>
    %69 = arith.addf %65, %68 : vector<1x256xf32>
    %c2_37 = arith.constant 2 : index
    %70 = memref.load %arg4[%c2_37] : memref<4xf32, #tpu.memory_space<smem>>
    %71 = vector.broadcast %70 : f32 to vector<1x256xf32>
    %72 = arith.addf %69, %71 : vector<1x256xf32>
    %cst_38 = arith.constant 0.000000e+00 : f32
    %73 = vector.broadcast %cst_38 : f32 to vector<1x256xf32>
    %74 = arith.maximumf %72, %73 : vector<1x256xf32>
    %c2_39 = arith.constant 2 : index
    %75 = memref.load %arg5[%c2_39] : memref<4xf32, #tpu.memory_space<smem>>
    %76 = vector.broadcast %75 : f32 to vector<1x256xf32>
    %77 = arith.mulf %76, %74 : vector<1x256xf32>
    %78 = arith.addf %54, %77 : vector<1x256xf32>
    %c3_40 = arith.constant 3 : index
    %c0_41 = arith.constant 0 : index
    %79 = memref.load %arg3[%c3_40, %c0_41] : memref<4x4xf32, #tpu.memory_space<smem>>
    %80 = vector.broadcast %79 : f32 to vector<1x256xf32>
    %81 = arith.mulf %1, %80 : vector<1x256xf32>
    %c3_42 = arith.constant 3 : index
    %c1_43 = arith.constant 1 : index
    %82 = memref.load %arg3[%c3_42, %c1_43] : memref<4x4xf32, #tpu.memory_space<smem>>
    %83 = vector.broadcast %82 : f32 to vector<1x256xf32>
    %84 = arith.mulf %83, %3 : vector<1x256xf32>
    %85 = arith.addf %81, %84 : vector<1x256xf32>
    %c3_44 = arith.constant 3 : index
    %c2_45 = arith.constant 2 : index
    %86 = memref.load %arg3[%c3_44, %c2_45] : memref<4x4xf32, #tpu.memory_space<smem>>
    %87 = vector.broadcast %86 : f32 to vector<1x256xf32>
    %88 = arith.mulf %87, %5 : vector<1x256xf32>
    %89 = arith.addf %85, %88 : vector<1x256xf32>
    %c3_46 = arith.constant 3 : index
    %c3_47 = arith.constant 3 : index
    %90 = memref.load %arg3[%c3_46, %c3_47] : memref<4x4xf32, #tpu.memory_space<smem>>
    %91 = vector.broadcast %90 : f32 to vector<1x256xf32>
    %92 = arith.mulf %91, %7 : vector<1x256xf32>
    %93 = arith.addf %89, %92 : vector<1x256xf32>
    %c3_48 = arith.constant 3 : index
    %94 = memref.load %arg4[%c3_48] : memref<4xf32, #tpu.memory_space<smem>>
    %95 = vector.broadcast %94 : f32 to vector<1x256xf32>
    %96 = arith.addf %93, %95 : vector<1x256xf32>
    %cst_49 = arith.constant 0.000000e+00 : f32
    %97 = vector.broadcast %cst_49 : f32 to vector<1x256xf32>
    %98 = arith.maximumf %96, %97 : vector<1x256xf32>
    %c3_50 = arith.constant 3 : index
    %99 = memref.load %arg5[%c3_50] : memref<4xf32, #tpu.memory_space<smem>>
    %100 = vector.broadcast %99 : f32 to vector<1x256xf32>
    %101 = arith.mulf %100, %98 : vector<1x256xf32>
    %102 = arith.addf %78, %101 : vector<1x256xf32>
    %c0_51 = arith.constant 0 : index
    %103 = memref.load %arg6[%c0_51] : memref<1xf32, #tpu.memory_space<smem>>
    %104 = vector.broadcast %103 : f32 to vector<1x256xf32>
    %105 = arith.addf %102, %104 : vector<1x256xf32>
    %106 = arith.negf %105 : vector<1x256xf32>
    %107 = math.exp %106 : vector<1x256xf32>
    %cst_52 = arith.constant 1.000000e+00 : f32
    %108 = vector.broadcast %cst_52 : f32 to vector<1x256xf32>
    %109 = arith.addf %108, %107 : vector<1x256xf32>
    %110 = arith.divf %108, %109 : vector<1x256xf32>
    %c0_53 = arith.constant 0 : index
    %c0_54 = arith.constant 0 : index
    %c0_55 = arith.constant 0 : index
    %111 = vector.load %arg7[%c0_53, %c0_54, %c0_55] : memref<1x1x256xf32, #tpu.memory_space<vmem>>, vector<1x1x256xf32>
    %112 = vector.shape_cast %111 : vector<1x1x256xf32> to vector<1x256xf32>
    %113 = vector.shape_cast %110 : vector<1x256xf32> to vector<1x1x256xf32>
    tpu.vector_store %arg7[%c0_53, %c0_54, %c0_55], %113 {strides = array<i32>} : memref<1x1x256xf32, #tpu.memory_space<vmem>>, vector<1x1x256xf32>,
    return
  }
  func.func @transform_0(%arg0: i32, %arg1: i32) -> (i32, i32, i32) {
    %c0_i32 = arith.constant 0 : i32
    %c0_i32_0 = arith.constant 0 : i32
    return %arg0, %c0_i32, %arg1 : i32, i32, i32
  }
  func.func @transform_1(%arg0: i32, %arg1: i32) -> (i32, i32) {
    %c0_i32 = arith.constant 0 : i32
    %c0_i32_0 = arith.constant 0 : i32
    %c0_i32_1 = arith.constant 0 : i32
    return %c0_i32, %c0_i32_0 : i32, i32
  }
  func.func @transform_2(%arg0: i32, %arg1: i32) -> i32 {
    %c0_i32 = arith.constant 0 : i32
    %c0_i32_0 = arith.constant 0 : i32
    return %c0_i32 : i32
  }
  func.func @transform_3(%arg0: i32, %arg1: i32) -> i32 {
    %c0_i32 = arith.constant 0 : i32
    %c0_i32_0 = arith.constant 0 : i32
    return %c0_i32 : i32
  }
  func.func @transform_4(%arg0: i32, %arg1: i32) -> i32 {
    %c0_i32 = arith.constant 0 : i32
    %c0_i32_0 = arith.constant 0 : i32
    return %c0_i32 : i32
  }
  func.func @transform_5(%arg0: i32, %arg1: i32) -> (i32, i32, i32) {
    %c0_i32 = arith.constant 0 : i32
    %c0_i32_0 = arith.constant 0 : i32
    return %arg0, %c0_i32, %arg1 : i32, i32, i32
  }
}

</mosaic_0001>

<llo_original>
// kernel: ms_decoder_forward.1
$region0: #{ms_decoder_forward.1}
  #allocation0 [shape = 'u32[]', space=smem, size = 0x4, offset = 0x4, fixed_abs, tag = 'smem constant byte address 0x4 - core index']
  #allocation1 [shape = 'u32[144,128]{1,0:T(1,128)}', space=vmem, size = 0x12000, scoped, tag = 'internal scratch']
  #allocation2 [shape = 'f32[1]{0:T(128)S(6)}', space=smem, size = 0x200, scoped, tag = 'scoped memory for ms_decoder_forward.1']
  %s0 = inlined_call_operand.vmem [shape: f32[2,4,256], index: 0, kind: input, shape index: {}]
  %s1 = inlined_call_operand.vmem [shape: f32[4,4], index: 1, kind: input, shape index: {}]
  %s2 = inlined_call_operand.vmem [shape: f32[4], index: 2, kind: input, shape index: {}]
  %s3 = inlined_call_operand.vmem [shape: f32[4], index: 3, kind: input, shape index: {}]
  %s4 = inlined_call_operand.<no memory space> [shape: f32[1], index: 4, kind: input, shape index: {}]
  %s5 = inlined_call_operand.vmem [shape: f32[2,1,256], index: 5, kind: output, shape index: {}]
  %s6 = sld [smem:[#allocation0]]
  $region65: #{ms_decoder_forward.1} parent=0
    _
  %s8 = ssub.s32 1, %s6
  %s9 = scalar_select 0, %s8, %s6
  %10 = sst [smem:[#allocation2]] %s4
  $region1: #{ms_decoder_forward.1} parent=0
    #allocation3 [shape = 'u8[2048]{0}', space=smem, size = 0x800, scoped, tag = 'input window, operand 1, single buffered']
    #allocation4 [shape = 's32[2]{0}', space=sflag, size = 0x8, scoped, tag = 'scoped memory for ms_decoder_forward.1']
    #allocation5 [shape = 'u8[512]{0}', space=smem, size = 0x200, scoped, tag = 'input window, operand 2, single buffered']
    #allocation6 [shape = 's32[1]{0}', space=sflag, size = 0x4, scoped, tag = 'scoped memory for ms_decoder_forward.1']
    #allocation7 [shape = 'u8[512]{0}', space=smem, size = 0x200, scoped, tag = 'input window, operand 3, single buffered']
    %11 = vsyncpa [#allocation4], 0
    %12 = vsyncpa [#allocation6], 0
    loop: start=0, step=1, limit=4
    $region2: #{ms_decoder_forward.1} parent=1 // loop_pre_header
      _
    $region3: #{ms_decoder_forward.1} parent=1 // loop_header
      %s14 = sphi 0, %s18
      %p15 = scmp.ge.s32.totalorder %s14, 4
      %s21 = sphi 0, %s33
      %s22 = sphi 0, %s29
      %s23 = sphi 0, %s21
      %s24 = sphi 0, %s22
      %s25 = sphi 0, %s23
      %s26 = sphi 0, %s24
      %s38 = sphi 0, %s40
      %s41 = sphi 0, %s38
      %s42 = sphi 0, %s41
      %s58 = sphi 0, %s42
      %s62 = sphi 0, %s62
      %s64 = sphi 0, %s62
      %s65 = sphi 0, %s64
      %s79 = sphi 0, %s65
      %s83 = sphi 0, %s83
      %s85 = sphi 0, %s83
      %s86 = sphi 0, %s85
      %s100 = sphi 0, %s86
      %s104 = sphi 0, %s104
      %s106 = sphi 0, %s104
      %s107 = sphi 0, %s106
      %s121 = sphi 0, %s107
      %s125 = sphi 0, %s125
      %s127 = sphi 0, %s125
      %s128 = sphi 0, %s127
      %s142 = sphi 0, %s128
      %s150 = sphi 0, %s152
      %s153 = sphi 0, %s150
      %s154 = sphi 0, %s153
      %s170 = sphi 0, %s154
    $region4: #{ms_decoder_forward.1} parent=1 // loop_header_branch
      %17 = sbr.rel (%p15) target = $region8
    $region5: #{ms_decoder_forward.1} parent=1 // loop_body
      %s19 = ssub.s32 %s14, 1
      %s20 = ssub.s32 %s14, 2
      %s27 = sadd.s32 1, %s22
      %p28 = scmp.ge.s32.totalorder %s27, 1
      %s29 = scalar_select %p28, 0, %s27
      %s30 = sadd.s32 1, %s21
      %s31 = scalar_select %p28, %s30, %s21
      %p32 = scmp.ge.s32.totalorder %s31, 2
      %s33 = scalar_select %p32, 0, %s31
      %s34 = ssub.s32 %s21, %s33
      %s35 = ssub.s32 %s22, %s29
      %s36 = sor.u32 %s34, %s35
      %p37 = scmp.eq.s32.totalorder %s36, 0
      %s39 = sadd.s32 %s38, 1
      %s40 = scalar_select %p37, %s38, %s39
      %p43 = pneg %p37
      %p44 = scmp.eq.s32.totalorder %s14, 1
      %p45 = por %p43, %p44
      %p46 = scmp.ne.s32.totalorder %s38, %s41
      %p47 = scmp.eq.s32.totalorder %s14, 0
      %p48 = por %p46, %p47
      %p49 = scmp.ne.s32.totalorder %s38, %s41
      %p50 = scmp.eq.s32.totalorder %s19, 1
      %p51 = por %p49, %p50
      %p52 = scmp.ne.s32.totalorder %s41, %s42
      %p53 = scmp.eq.s32.totalorder %s19, 0
      %p54 = por %p52, %p53
      %p55 = scmp.ne.s32.totalorder %s41, %s42
      %p56 = scmp.eq.s32.totalorder %s20, 1
      %p57 = por %p55, %p56
      %p59 = scmp.ne.s32.totalorder %s42, %s58
      %p60 = scmp.eq.s32.totalorder %s20, 0
      %p61 = por %p59, %p60
      %s63 = sadd.s32 %s62, 1
      %p66 = scmp.eq.s32.totalorder %s14, 1
      %p67 = scmp.ne.s32.totalorder %s62, %s64
      %p68 = scmp.eq.s32.totalorder %s14, 0
      %p69 = por %p67, %p68
      %p70 = scmp.ne.s32.totalorder %s62, %s64
      %p71 = scmp.eq.s32.totalorder %s19, 1
      %p72 = por %p70, %p71
      %p73 = scmp.ne.s32.totalorder %s64, %s65
      %p74 = scmp.eq.s32.totalorder %s19, 0
      %p75 = por %p73, %p74
      %p76 = scmp.ne.s32.totalorder %s64, %s65
      %p77 = scmp.eq.s32.totalorder %s20, 1
      %p78 = por %p76, %p77
      %p80 = scmp.ne.s32.totalorder %s65, %s79
      %p81 = scmp.eq.s32.totalorder %s20, 0
      %p82 = por %p80, %p81
      %s84 = sadd.s32 %s83, 1
      %p87 = scmp.eq.s32.totalorder %s14, 1
      %p88 = scmp.ne.s32.totalorder %s83, %s85
      %p89 = scmp.eq.s32.totalorder %s14, 0
      %p90 = por %p88, %p89
      %p91 = scmp.ne.s32.totalorder %s83, %s85
      %p92 = scmp.eq.s32.totalorder %s19, 1
      %p93 = por %p91, %p92
      %p94 = scmp.ne.s32.totalorder %s85, %s86
      %p95 = scmp.eq.s32.totalorder %s19, 0
      %p96 = por %p94, %p95
      %p97 = scmp.ne.s32.totalorder %s85, %s86
      %p98 = scmp.eq.s32.totalorder %s20, 1
      %p99 = por %p97, %p98
      %p101 = scmp.ne.s32.totalorder %s86, %s100
      %p102 = scmp.eq.s32.totalorder %s20, 0
      %p103 = por %p101, %p102
      %s105 = sadd.s32 %s104, 1
      %p108 = scmp.eq.s32.totalorder %s14, 1
      %p109 = scmp.ne.s32.totalorder %s104, %s106
      %p110 = scmp.eq.s32.totalorder %s14, 0
      %p111 = por %p109, %p110
      %p112 = scmp.ne.s32.totalorder %s104, %s106
      %p113 = scmp.eq.s32.totalorder %s19, 1
      %p114 = por %p112, %p113
      %p115 = scmp.ne.s32.totalorder %s106, %s107
      %p116 = scmp.eq.s32.totalorder %s19, 0
      %p117 = por %p115, %p116
      %p118 = scmp.ne.s32.totalorder %s106, %s107
      %p119 = scmp.eq.s32.totalorder %s20, 1
      %p120 = por %p118, %p119
      %p122 = scmp.ne.s32.totalorder %s107, %s121
      %p123 = scmp.eq.s32.totalorder %s20, 0
      %p124 = por %p122, %p123
      %s126 = sadd.s32 %s125, 1
      %p129 = scmp.eq.s32.totalorder %s14, 1
      %p130 = scmp.ne.s32.totalorder %s125, %s127
      %p131 = scmp.eq.s32.totalorder %s14, 0
      %p132 = por %p130, %p131
      %p133 = scmp.ne.s32.totalorder %s125, %s127
      %p134 = scmp.eq.s32.totalorder %s19, 1
      %p135 = por %p133, %p134
      %p136 = scmp.ne.s32.totalorder %s127, %s128
      %p137 = scmp.eq.s32.totalorder %s19, 0
      %p138 = por %p136, %p137
      %p139 = scmp.ne.s32.totalorder %s127, %s128
      %p140 = scmp.eq.s32.totalorder %s20, 1
      %p141 = por %p139, %p140
      %p143 = scmp.ne.s32.totalorder %s128, %s142
      %p144 = scmp.eq.s32.totalorder %s20, 0
      %p145 = por %p143, %p144
      %s146 = ssub.s32 %s21, %s33
      %s147 = ssub.s32 %s22, %s29
      %s148 = sor.u32 %s146, %s147
      %p149 = scmp.eq.s32.totalorder %s148, 0
      %s151 = sadd.s32 %s150, 1
      %s152 = scalar_select %p149, %s150, %s151
      %p155 = pneg %p149
      %p156 = scmp.eq.s32.totalorder %s14, 1
      %p157 = por %p155, %p156
      %p158 = scmp.ne.s32.totalorder %s150, %s153
      %p159 = scmp.eq.s32.totalorder %s14, 0
      %p160 = por %p158, %p159
      %p161 = scmp.ne.s32.totalorder %s150, %s153
      %p162 = scmp.eq.s32.totalorder %s19, 1
      %p163 = por %p161, %p162
      %p164 = scmp.ne.s32.totalorder %s153, %s154
      %p165 = scmp.eq.s32.totalorder %s19, 0
      %p166 = por %p164, %p165
      %p167 = scmp.ne.s32.totalorder %s153, %s154
      %p168 = scmp.eq.s32.totalorder %s20, 1
      %p169 = por %p167, %p168
      %p171 = scmp.ne.s32.totalorder %s154, %s170
      %p172 = scmp.eq.s32.totalorder %s20, 0
      %p173 = por %p171, %p172
      %p174 = scmp.le.s32.totalorder 1, %s14
      %p175 = scmp.lt.s32.totalorder %s14, 3
      %p176 = pnand %p174, %p175
      %p177 = pneg %p176
      // Predicated region
      $region9: #{ms_decoder_forward.1} parent=5 // pred_check
        _
      $region10: #{ms_decoder_forward.1} parent=5 // pred_check_branch
        %179 = sbr.rel (%p176) target = $region12
      $region11: #{ms_decoder_forward.1} parent=5 // pred_region
        %s180 = ssub.s32 %s14, 1
        // Predicated region
        $region13: #{ms_decoder_forward.1} parent=11 // pred_check
          %p181 = pneg %p75
        $region14: #{ms_decoder_forward.1} parent=11 // pred_check_branch
          %183 = sbr.rel (%p181) target = $region16
        $region15: #{ms_decoder_forward.1} parent=11 // pred_region
          %s185 = ssub.s32 64, 64
          %186 = vsyncadd [#allocation4], %s185
          %s188 = sshll.u32 %s1, 4
          %s189 = int_to_ptr.vmem [resolvable:$true] %s188
          %191 = dma.vmem_to_smem %s189, 64, [#allocation3], [#allocation4]
        $region16: #{ms_decoder_forward.1} parent=11 // pred_fallthru
          _
        // Predicated region
        $region17: #{ms_decoder_forward.1} parent=11 // pred_check
          %p192 = pneg %p96
        $region18: #{ms_decoder_forward.1} parent=11 // pred_check_branch
          %194 = sbr.rel (%p192) target = $region20
        $region19: #{ms_decoder_forward.1} parent=11 // pred_region
          %s196 = ssub.s32 16, 16
          %197 = vsyncadd [#allocation6], %s196
          %s199 = sshll.u32 %s2, 4
          %s200 = int_to_ptr.vmem [resolvable:$true] %s199
          %202 = dma.vmem_to_smem %s200, 16, [#allocation5], [#allocation6]
        $region20: #{ms_decoder_forward.1} parent=11 // pred_fallthru
          _
        // Predicated region
        $region21: #{ms_decoder_forward.1} parent=11 // pred_check
          %p203 = pneg %p117
        $region22: #{ms_decoder_forward.1} parent=11 // pred_check_branch
          %205 = sbr.rel (%p203) target = $region24
        $region23: #{ms_decoder_forward.1} parent=11 // pred_region
          %s207 = ssub.s32 16, 16
          %208 = vsyncadd [#allocation6], %s207
          %s210 = sshll.u32 %s3, 4
          %s211 = int_to_ptr.vmem [resolvable:$true] %s210
          %213 = dma.vmem_to_smem %s211, 16, [#allocation7], [#allocation6]
        $region24: #{ms_decoder_forward.1} parent=11 // pred_fallthru
          _
        // Predicated region
        $region25: #{ms_decoder_forward.1} parent=11 // pred_check
          %p214 = pneg %p138
        $region26: #{ms_decoder_forward.1} parent=11 // pred_check_branch
          %216 = sbr.rel (%p214) target = $region28
        $region27: #{ms_decoder_forward.1} parent=11 // pred_region
          _
        $region28: #{ms_decoder_forward.1} parent=11 // pred_fallthru
          _
      $region12: #{ms_decoder_forward.1} parent=5 // pred_fallthru
        _
      %p217 = scmp.lt.s32.totalorder %s14, 2
      // Predicated region
      $region29: #{ms_decoder_forward.1} parent=5 // pred_check
        %p218 = pneg %p217
      $region30: #{ms_decoder_forward.1} parent=5 // pred_check_branch
        %220 = sbr.rel (%p218) target = $region32
      $region31: #{ms_decoder_forward.1} parent=5 // pred_region
        // Predicated region
        $region33: #{ms_decoder_forward.1} parent=31 // pred_check
          %p221 = pneg %p48
        $region34: #{ms_decoder_forward.1} parent=31 // pred_check_branch
          %223 = sbr.rel (%p221) target = $region36
        $region35: #{ms_decoder_forward.1} parent=31 // pred_region
          %s224 = smul.u32 2, %s22
          %p225 = scmp.lt.s32.totalorder %s21, 1
          %s226 = scalar_select %p225, %s21, 1
          %p227 = scmp.lt.s32.totalorder %s224, 1
          %s228 = scalar_select %p227, %s224, 1
          %s229 = smul.addr %s226, 2
          %s230 = sadd.s32 %s228, %s229
          %s231 = smul.addr %s230, 4
          %s232 = scalar_lea.vmem %s0, %s231
          %s233 = smul.u32 2, %s22
        $region36: #{ms_decoder_forward.1} parent=31 // pred_fallthru
          _
      $region32: #{ms_decoder_forward.1} parent=5 // pred_fallthru
        _
      %p234 = scmp.le.s32.totalorder 1, %s14
      %p235 = scmp.lt.s32.totalorder %s14, 3
      %p236 = pnand %p234, %p235
      %p237 = pneg %p236
      // Predicated region
      $region37: #{ms_decoder_forward.1} parent=5 // pred_check
        _
      $region38: #{ms_decoder_forward.1} parent=5 // pred_check_branch
        %239 = sbr.rel (%p236) target = $region40
      $region39: #{ms_decoder_forward.1} parent=5 // pred_region
        %s240 = ssub.s32 %s14, 1
        // Predicated region
        $region41: #{ms_decoder_forward.1} parent=39 // pred_check
          %p241 = pneg %p75
        $region42: #{ms_decoder_forward.1} parent=39 // pred_check_branch
          %243 = sbr.rel (%p241) target = $region44
        $region43: #{ms_decoder_forward.1} parent=39 // pred_region
          %244 = dma.done [#allocation4], 64
        $region44: #{ms_decoder_forward.1} parent=39 // pred_fallthru
          _
        // Predicated region
        $region45: #{ms_decoder_forward.1} parent=39 // pred_check
          %p245 = pneg %p96
        $region46: #{ms_decoder_forward.1} parent=39 // pred_check_branch
          %247 = sbr.rel (%p245) target = $region48
        $region47: #{ms_decoder_forward.1} parent=39 // pred_region
          %248 = dma.done [#allocation6], 16
        $region48: #{ms_decoder_forward.1} parent=39 // pred_fallthru
          _
        // Predicated region
        $region49: #{ms_decoder_forward.1} parent=39 // pred_check
          %p249 = pneg %p117
        $region50: #{ms_decoder_forward.1} parent=39 // pred_check_branch
          %251 = sbr.rel (%p249) target = $region52
        $region51: #{ms_decoder_forward.1} parent=39 // pred_region
          %252 = dma.done [#allocation6], 16
        $region52: #{ms_decoder_forward.1} parent=39 // pred_fallthru
          _
        %253 = sfence
        %s254 = smul.u32 2, %s24
        %p255 = scmp.lt.s32.totalorder %s23, 1
        %s256 = scalar_select %p255, %s23, 1
        %p257 = scmp.lt.s32.totalorder %s254, 1
        %s258 = scalar_select %p257, %s254, 1
        %s259 = smul.addr %s256, 2
        %s260 = sadd.s32 %s258, %s259
        %s261 = smul.addr %s260, 4
        %s262 = scalar_lea.vmem %s0, %s261
        %p263 = pneg %p54
        %p264 = pneg %p51
        %p265 = pneg %p75
        %p266 = pneg %p72
        %p267 = pneg %p96
        %p268 = pneg %p93
        %p269 = pneg %p117
        %p270 = pneg %p114
        %p271 = pneg %p138
        %p272 = pneg %p135
        %p273 = pneg %p166
        %p274 = pneg %p163
        %s275 = smul.u32 2, %s24
        %p276 = scmp.lt.s32.totalorder %s23, 1
        %s277 = scalar_select %p276, %s23, 1
        %p278 = scmp.lt.s32.totalorder %s275, 1
        %s279 = scalar_select %p278, %s275, 1
        %s280 = smul.addr %s277, 2
        %s281 = sadd.s32 %s279, %s280
        %s282 = scalar_lea.vmem %s5, %s281
        %s283 = smul.u32 2, %s24
        %p284 = scmp.lt.s32.totalorder %s23, 1
        %s285 = scalar_select %p284, %s23, 1
        %p286 = scmp.lt.s32.totalorder %s283, 1
        %s287 = scalar_select %p286, %s283, 1
        %s288 = smul.addr %s285, 2
        %s289 = sadd.s32 %s287, %s288
        %s290 = smul.addr %s289, 4
        %s291 = scalar_lea.vmem %s0, %s290
        %s292 = smul.u32 2, %s24
        %s293 = smul.u32 2, %s24
        %p294 = scmp.lt.s32.totalorder %s23, 1
        %s295 = scalar_select %p294, %s23, 1
        %p296 = scmp.lt.s32.totalorder %s293, 1
        %s297 = scalar_select %p296, %s293, 1
        %s298 = smul.addr %s295, 2
        %s299 = sadd.s32 %s297, %s298
        %s300 = scalar_lea.vmem %s5, %s299
        %s301 = smul.u32 2, %s24
        %v302 = vld [vmem:[%s291] ss:$4 sm:$0x3]
        %s303 = scalar_lea.vmem %s291, 1
        %v304 = vld [vmem:[%s303] ss:$4 sm:$0x3]
        %s305 = scalar_lea.vmem %s291, 2
        %v306 = vld [vmem:[%s305] ss:$4 sm:$0x3]
        %s307 = scalar_lea.vmem %s291, 3
        %v308 = vld [vmem:[%s307] ss:$4 sm:$0x3]
        %s309 = sld [smem:[#allocation3]]
        %v310 = vstv %s309
        %v311 = vmul.f32 %v302, %v310
        %s312 = sld [smem:[#allocation3 + $0x1]]
        %v313 = vstv %s312
        %v314 = vmul.f32 %v313, %v304
        %v315 = vadd.f32 %v311, %v314
        %s316 = sld [smem:[#allocation3 + $0x2]]
        %v317 = vstv %s316
        %v318 = vmul.f32 %v317, %v306
        %v319 = vadd.f32 %v315, %v318
        %s320 = sld [smem:[#allocation3 + $0x3]]
        %v321 = vstv %s320
        %v322 = vmul.f32 %v321, %v308
        %v323 = vadd.f32 %v319, %v322
        %s324 = sld [smem:[#allocation5]]
        %v325 = vstv %s324
        %v326 = vadd.f32 %v323, %v325
        %v327 = vmax.f32 %v326, 0.0
        %s328 = sld [smem:[#allocation7]]
        %v329 = vstv %s328
        %v330 = vmul.f32 %v329, %v327
        %s331 = sld [smem:[#allocation3 + $0x80]]
        %v332 = vstv %s331
        %v333 = vmul.f32 %v302, %v332
        %s334 = sld [smem:[#allocation3 + $0x81]]
        %v335 = vstv %s334
        %v336 = vmul.f32 %v335, %v304
        %v337 = vadd.f32 %v333, %v336
        %s338 = sld [smem:[#allocation3 + $0x82]]
        %v339 = vstv %s338
        %v340 = vmul.f32 %v339, %v306
        %v341 = vadd.f32 %v337, %v340
        %s342 = sld [smem:[#allocation3 + $0x83]]
        %v343 = vstv %s342
        %v344 = vmul.f32 %v343, %v308
        %v345 = vadd.f32 %v341, %v344
        %s346 = sld [smem:[#allocation5 + $0x1]]
        %v347 = vstv %s346
        %v348 = vadd.f32 %v345, %v347
        %v349 = vmax.f32 %v348, 0.0
        %s350 = sld [smem:[#allocation7 + $0x1]]
        %v351 = vstv %s350
        %v352 = vmul.f32 %v351, %v349
        %v353 = vadd.f32 %v330, %v352
        %s354 = sld [smem:[#allocation3 + $0x100]]
        %v355 = vstv %s354
        %v356 = vmul.f32 %v302, %v355
        %s357 = sld [smem:[#allocation3 + $0x101]]
        %v358 = vstv %s357
        %v359 = vmul.f32 %v358, %v304
        %v360 = vadd.f32 %v356, %v359
        %s361 = sld [smem:[#allocation3 + $0x102]]
        %v362 = vstv %s361
        %v363 = vmul.f32 %v362, %v306
        %v364 = vadd.f32 %v360, %v363
        %s365 = sld [smem:[#allocation3 + $0x103]]
        %v366 = vstv %s365
        %v367 = vmul.f32 %v366, %v308
        %v368 = vadd.f32 %v364, %v367
        %s369 = sld [smem:[#allocation5 + $0x2]]
        %v370 = vstv %s369
        %v371 = vadd.f32 %v368, %v370
        %v372 = vmax.f32 %v371, 0.0
        %s373 = sld [smem:[#allocation7 + $0x2]]
        %v374 = vstv %s373
        %v375 = vmul.f32 %v374, %v372
        %v376 = vadd.f32 %v353, %v375
        %s377 = sld [smem:[#allocation3 + $0x180]]
        %v378 = vstv %s377
        %v379 = vmul.f32 %v302, %v378
        %s380 = sld [smem:[#allocation3 + $0x181]]
        %v381 = vstv %s380
        %v382 = vmul.f32 %v381, %v304
        %v383 = vadd.f32 %v379, %v382
        %s384 = sld [smem:[#allocation3 + $0x182]]
        %v385 = vstv %s384
        %v386 = vmul.f32 %v385, %v306
        %v387 = vadd.f32 %v383, %v386
        %s388 = sld [smem:[#allocation3 + $0x183]]
        %v389 = vstv %s388
        %v390 = vmul.f32 %v389, %v308
        %v391 = vadd.f32 %v387, %v390
        %s392 = sld [smem:[#allocation5 + $0x3]]
        %v393 = vstv %s392
        %v394 = vadd.f32 %v391, %v393
        %v395 = vmax.f32 %v394, 0.0
        %s396 = sld [smem:[#allocation7 + $0x3]]
        %v397 = vstv %s396
        %v398 = vmul.f32 %v397, %v395
        %v399 = vadd.f32 %v376, %v398
        %s400 = sld [smem:[#allocation2]]
        %v401 = vstv %s400
        %v402 = vadd.f32 %v399, %v401
        %v403 = vxor.u32 %v402, 2147483648
        %v404 = vmul.f32 %v403, 1.442695
        %v405 = vpow.pop %v404
        %v406 = vadd.f32 %v405, 1.0
        %v407 = vrcp.pop %v406
        %v408 = vmul.f32 1.0, %v407
        %v409 = vlaneseq
        %vm410 = vcmp.ge.s32.totalorder %v409, 0
        %vm411 = vcmp.lt.s32.totalorder %v409, 256
        %vm412 = vmand %vm410, %vm411
        %413 = vst.msk [vmem:[%s300] sm:$0x3] %vm412, %v408
        %s414 = smul.u32 2, %s24
        %p415 = scmp.lt.s32.totalorder %s23, 1
        %s416 = scalar_select %p415, %s23, 1
        %p417 = scmp.lt.s32.totalorder %s414, 1
        %s418 = scalar_select %p417, %s414, 1
        %s419 = smul.addr %s416, 2
        %s420 = sadd.s32 %s418, %s419
        %s421 = scalar_lea.vmem %s5, %s420
        // Predicated region
        $region53: #{ms_decoder_forward.1} parent=39 // pred_check
          %p422 = pneg %p163
        $region54: #{ms_decoder_forward.1} parent=39 // pred_check_branch
          %424 = sbr.rel (%p422) target = $region56
        $region55: #{ms_decoder_forward.1} parent=39 // pred_region
          %s425 = smul.u32 2, %s24
        $region56: #{ms_decoder_forward.1} parent=39 // pred_fallthru
          _
      $region40: #{ms_decoder_forward.1} parent=5 // pred_fallthru
        _
      %p426 = scmp.le.s32.totalorder 2, %s14
      // Predicated region
      $region57: #{ms_decoder_forward.1} parent=5 // pred_check
        %p427 = pneg %p426
      $region58: #{ms_decoder_forward.1} parent=5 // pred_check_branch
        %429 = sbr.rel (%p427) target = $region60
      $region59: #{ms_decoder_forward.1} parent=5 // pred_region
        %s430 = ssub.s32 %s14, 2
        // Predicated region
        $region61: #{ms_decoder_forward.1} parent=59 // pred_check
          %p431 = pneg %p169
        $region62: #{ms_decoder_forward.1} parent=59 // pred_check_branch
          %433 = sbr.rel (%p431) target = $region64
        $region63: #{ms_decoder_forward.1} parent=59 // pred_region
          %s434 = smul.u32 2, %s26
          %p435 = scmp.lt.s32.totalorder %s25, 1
          %s436 = scalar_select %p435, %s25, 1
          %p437 = scmp.lt.s32.totalorder %s434, 1
          %s438 = scalar_select %p437, %s434, 1
          %s439 = smul.addr %s436, 2
          %s440 = sadd.s32 %s438, %s439
          %s441 = scalar_lea.vmem %s5, %s440
        $region64: #{ms_decoder_forward.1} parent=59 // pred_fallthru
          _
      $region60: #{ms_decoder_forward.1} parent=5 // pred_fallthru
        _
    $region6: #{ms_decoder_forward.1} parent=1 // loop_footer
      %s18 = sadd.s32 1, %s14
    $region7: #{ms_decoder_forward.1} parent=1 // loop_footer_branch
      %13 = sbr.rel target = $region3
    $region8: #{ms_decoder_forward.1} parent=1 // loop_exit
      _
    %442 = vsyncpa [#allocation4], 1
    %s443 = scalar_lea.sflag [#allocation4], 1
    %444 = vsyncpa %s443, 1
    %445 = vsyncpa [#allocation6], 1

</llo_original>
